<compile_context>
chip_gen: v6e
topology: v6e:2x2x1
jax: 0.10.0
libtpu: 0.0.40
codegen_flags: <defaults>
</compile_context>

<pallas_src>
import functools

import jax
import jax.numpy as jnp
from jax.experimental import pallas as pl
from jax.experimental.pallas import tpu as pltpu

NUM_CLASSES = 2
S_ = 1 + NUM_CLASSES                          # 3
PDIM = S_ + 4                                 # 7
GDIM = 1 + NUM_CLASSES + 1 + 4 + 1 + 1 + 1    # 11
GOFF = PDIM                                   # gres channel offset in packed tensor
CTOT = PDIM + GDIM                            # 18 packed channels
FSIZES = (20, 10, 5, 3)                       # -> N = 534
NPAD = 1024                                   # 8 * 128 lane-dense packing
ROWS = NPAD // 128                            # 8
ALPHA = 0.25    # TODO(synk): exact focalloss_fcos hyperparams unknown; standard alpha/gamma used
GAMMA = 2.0     # gamma == 2 is implemented as an explicit square below
EPS = 1e-6


def _softplus(x):
    # Numerically stable softplus built from plain exp/log (Mosaic-friendly).
    return jnp.maximum(x, 0.0) + jnp.log(1.0 + jnp.exp(-jnp.abs(x)))


# --------------------------------------------------------------------------
# Pallas kernel: bb images per grid step, per-image partial sums -> SMEM
# --------------------------------------------------------------------------
def _floss_kernel(packed_ref, anc_ref, valid_ref, out_ref):
    # packed_ref: (bb, CTOT, 8, 128)  channels [0:PDIM] = prediction logits,
    #                                 channels [GOFF:GOFF+GDIM] = matched GT
    # anc_ref:    (2, 8, 128)         anchor centers (cx, cy), lane-packed
    # valid_ref:  (8, 128)            1.0 for the first N real anchors, 0.0 pad
    # out_ref:    (bb, 8) SMEM        per-image partial sums
    bb = out_ref.shape[0]
    valid = valid_ref[...]

    # ---------------- cls focal loss (all anchors, pos + neg) ----------------
    # softplus(-x) computed once; softplus(x) = softplus(-x) + x (plain add);
    # sigmoid(x) = exp(-softplus(-x)).  Halves EUP traffic vs the naive chain.
    l_pos_2d = None
    l_neg_2d = None
    for c in range(S_):
        x = packed_ref[:, c]                   # (bb, 8, 128) logits
        g = packed_ref[:, GOFF + c]            # (bb, 8, 128) targets
        sp_neg = _softplus(-x)                 # = -log(sigmoid(x))
        sp_pos = sp_neg + x                    # = -log(1 - sigmoid(x)), EUP-free
        p = jnp.exp(-sp_neg)                   # = sigmoid(x)
        omp = 1.0 - p
        lp = (ALPHA * sp_neg) * (omp * omp) * g
        ln = ((1.0 - ALPHA) * sp_pos) * (p * p) * (1.0 - g)
        l_pos_2d = lp if l_pos_2d is None else l_pos_2d + lp
        l_neg_2d = ln if l_neg_2d is None else l_neg_2d + ln
    # valid mask is channel-independent -> apply once after the channel sum.
    # (l_pos is already zero on padded lanes because the padded targets are 0.)
    l_neg_2d = l_neg_2d * valid

    # Reduce immediately so the cls temporaries die before the GIoU block.
    for b in range(bb):
        out_ref[b, 0] = jnp.sum(l_pos_2d[b])
        out_ref[b, 1] = jnp.sum(l_neg_2d[b])

    # ---------------- conf loss (BCE vs 1, radius positives only) ------------
    # NOTE: channel S_ shared with the first box offset, as in the reference.
    mask_pp = (packed_ref[:, GOFF + S_ + 5] == 1.0).astype(jnp.float32)
    conf_map = _softplus(-packed_ref[:, S_]) * mask_pp   # -log(sigmoid) * mask
    for b in range(bb):
        out_ref[b, 2] = jnp.sum(conf_map[b])

    # ---------------- in-box positive mask ----------------
    mask_pos = (packed_ref[:, GOFF] == 0.0).astype(jnp.float32) * valid
    for b in range(bb):
        out_ref[b, 3] = jnp.sum(mask_pos[b])

    # ---------------- box decode + GIoU (in-box positives) ----------------
    # TODO(synk): exact boxes_decode4fcos semantics unknown; exp-constrained
    #             ltrb offsets around normalized anchor centers are used.
    cx = anc_ref[0]
    cy = anc_ref[1]
    pl_ = cx - jnp.exp(packed_ref[:, S_ + 0])
    pt_ = cy - jnp.exp(packed_ref[:, S_ + 1])
    pr_ = cx + jnp.exp(packed_ref[:, S_ + 2])
    pb_ = cy + jnp.exp(packed_ref[:, S_ + 3])
    gl_ = packed_ref[:, GOFF + S_ + 1]
    gt_ = packed_ref[:, GOFF + S_ + 2]
    gr_ = packed_ref[:, GOFF + S_ + 3]
    gb_ = packed_ref[:, GOFF + S_ + 4]

    il = jnp.maximum(pl_, gl_)
    it = jnp.maximum(pt_, gt_)
    ir = jnp.minimum(pr_, gr_)
    ib = jnp.minimum(pb_, gb_)
    inter = jnp.maximum(ir - il, 0.0) * jnp.maximum(ib - it, 0.0)
    area_p = (pr_ - pl_) * (pb_ - pt_)
    area_g = (gr_ - gl_) * (gb_ - gt_)
    union = area_p + area_g - inter
    iou = inter / (union + EPS)                 # exact divide (reference parity)

    cl = jnp.minimum(pl_, gl_)
    ct = jnp.minimum(pt_, gt_)
    cr = jnp.maximum(pr_, gr_)
    cb = jnp.maximum(pb_, gb_)
    area_c = (cr - cl) * (cb - ct)
    giou = iou - (area_c - union) / (area_c + EPS)

    gcenterness = packed_ref[:, GOFF + S_]
    reg_map = mask_pos * (1.0 - giou) * gcenterness
    for b in range(bb):
        out_ref[b, 4] = jnp.sum(reg_map[b])


# --------------------------------------------------------------------------
# Wrapper
# --------------------------------------------------------------------------
def _use_batch_parallel_grid():
    """True only on TPU v7x (2 TensorCores/chip); v5e/v6e keep grid=(1,)."""
    try:
        kind = jax.devices()[0].device_kind.lower()
    except Exception:
        return False
    return ("v7" in kind) or ("7x" in kind)


@functools.partial(jax.jit, static_argnames=("batch_parallel",))
def floss_pallas(outs, gres, anc_packed, valid_packed, *, batch_parallel=False):
    """outs: (B, N, PDIM) f32, gres: (B, N, GDIM) f32, anc_packed: (2, 8, 128),
    valid_packed: (8, 128)."""
    B, N, P = outs.shape
    G = gres.shape[-1]
    assert P == PDIM and G == GDIM and N <= NPAD and NPAD % 128 == 0

    # One transpose+pad for BOTH tensors (halves the wrapper packing work).
    combined = jnp.concatenate(
        [outs.astype(jnp.float32), gres.astype(jnp.float32)], axis=-1)   # (B,N,CTOT)
    combined = jnp.transpose(combined, (0, 2, 1))                        # (B,CTOT,N)
    combined = jnp.pad(combined, ((0, 0), (0, 0), (0, NPAD - N)))
    packed = combined.reshape(B, CTOT, ROWS, 128)

    # TODO(synk): if N/B ever scale to real FCOS sizes (~20k anchors, B=32),
    #             add a grid axis over the packed anchor-row dimension with
    #             pl.when-gated partial-sum accumulation to stay inside v7x's
    #             64 MiB VMEM.  At N=534/B=2 the whole problem is ~150 KiB.
    if batch_parallel and B > 1:
        grid = (B,)
        bb = 1
        dim_sem = ("parallel",)   # split the batch across the 2 v7x TensorCores
        out_spec = pl.BlockSpec((1, 8), lambda i: (i, 0),
                                memory_space=pltpu.MemorySpace.SMEM)
    else:
        grid = (1,)
        bb = B
        dim_sem = ("arbitrary",)  # single TC: one step avoids per-step overhead
        out_spec = pl.BlockSpec(memory_space=pltpu.MemorySpace.SMEM)

    partial_sums = pl.pallas_call(
        _floss_kernel,
        out_shape=jax.ShapeDtypeStruct((B, 8), jnp.float32),
        grid=grid,
        in_specs=[
            pl.BlockSpec((bb, CTOT, ROWS, 128), lambda i: (i, 0, 0, 0)),
            pl.BlockSpec((2, ROWS, 128), lambda i: (0, 0, 0)),
            pl.BlockSpec((ROWS, 128), lambda i: (0, 0)),
        ],
        out_specs=out_spec,
        compiler_params=pltpu.CompilerParams(dimension_semantics=dim_sem),
    )(packed, anc_packed, valid_packed)

    sum_cls_pos = partial_sums[:, 0]
    sum_cls_neg = partial_sums[:, 1]
    sum_conf = partial_sums[:, 2]
    num_pos = partial_sums[:, 3]
    sum_reg = partial_sums[:, 4]

    nums_pos = jnp.maximum(num_pos, 1.0)
    l_cls_pos = jnp.mean(sum_cls_pos / nums_pos)
    l_cls_neg = jnp.mean(sum_cls_neg / nums_pos)
    l_conf = 5.0 * jnp.mean(sum_conf / nums_pos)
    total_pos = jnp.maximum(jnp.sum(num_pos), 1.0)   # mean over all batch positives
    l_reg = 5.0 * jnp.sum(sum_reg) / total_pos
    l_total = l_cls_pos + l_cls_neg + l_conf + l_reg
    return l_total, (l_cls_pos, l_cls_neg, l_conf, l_reg)


# --------------------------------------------------------------------------
# Plain-JAX glue: anchor grid + FCOS-style GT matching (match4fcos_v2 analog)
# --------------------------------------------------------------------------
def make_anchors(fsizes):
    pts = []
    for fs in fsizes:
        ys, xs = jnp.meshgrid(jnp.arange(fs, dtype=jnp.float32),
                              jnp.arange(fs, dtype=jnp.float32), indexing="ij")
        cx = (xs.reshape(-1) + 0.5) / fs
        cy = (ys.reshape(-1) + 0.5) / fs
        pts.append(jnp.stack([cx, cy], axis=-1))
    return jnp.concatenate(pts, axis=0)                           # (N, 2)


def match4fcos_v2_jax(gboxes_ltrb, glabels, anchors):
    # TODO(synk): exact match4fcos_v2 (per-level scale ranges / center-sampling radius)
    #             is approximated with in-box matching + smallest-area tie-break.
    N = anchors.shape[0]
    cx = anchors[:, 0:1]                                          # (N, 1)
    cy = anchors[:, 1:2]
    l_off = cx - gboxes_ltrb[None, :, 0]                          # (N, M)
    t_off = cy - gboxes_ltrb[None, :, 1]
    r_off = gboxes_ltrb[None, :, 2] - cx
    b_off = gboxes_ltrb[None, :, 3] - cy
    inside = (jnp.minimum(jnp.minimum(l_off, t_off), jnp.minimum(r_off, b_off)) > 0.0)

    areas = ((gboxes_ltrb[:, 2] - gboxes_ltrb[:, 0])
             * (gboxes_ltrb[:, 3] - gboxes_ltrb[:, 1]))            # (M,)
    area_masked = jnp.where(inside, areas[None, :], jnp.inf)
    gt_idx = jnp.argmin(area_masked, axis=1)                      # (N,)
    pos = jnp.any(inside, axis=1)                                 # (N,)

    take = lambda a: jnp.take_along_axis(a, gt_idx[:, None], axis=1)[:, 0]
    lm, tm_, rm, bm = take(l_off), take(t_off), take(r_off), take(b_off)
    centerness = jnp.sqrt(jnp.clip(
        (jnp.minimum(lm, rm) / jnp.maximum(lm, rm))
        * (jnp.minimum(tm_, bm) / jnp.maximum(tm_, bm)), 0.0, 1.0))
    centerness = jnp.where(pos, centerness, 0.0)

    matched_box = gboxes_ltrb[gt_idx]                             # (N, 4)
    matched_lab = glabels[gt_idx]                                 # (N,) 1-based
    gcx = 0.5 * (matched_box[:, 0] + matched_box[:, 2])
    gcy = 0.5 * (matched_box[:, 1] + matched_box[:, 3])
    gw = matched_box[:, 2] - matched_box[:, 0]
    gh = matched_box[:, 3] - matched_box[:, 1]
    near_center = (jnp.abs(anchors[:, 0] - gcx) < 0.25 * gw) & \
                  (jnp.abs(anchors[:, 1] - gcy) < 0.25 * gh)
    mask_pp = (pos & near_center).astype(jnp.float32)

    posf = pos.astype(jnp.float32)
    gres = jnp.zeros((N, GDIM), jnp.float32)
    gres = gres.at[:, 0].set(1.0 - posf)                          # 0 => in-box positive
    onehot = jax.nn.one_hot(matched_lab.astype(jnp.int32) - 1, NUM_CLASSES)
    gres = gres.at[:, 1:1 + NUM_CLASSES].set(onehot * posf[:, None])
    gres = gres.at[:, S_].set(centerness)                         # centerness target
    gres = gres.at[:, S_ + 1:S_ + 5].set(matched_box * posf[:, None])
    gres = gres.at[:, S_ + 5].set(mask_pp)                        # radius-positive flag
    gres = gres.at[:, S_ + 6].set(jnp.take(areas, gt_idx) * posf) # aux (unused by loss)
    gres = gres.at[:, S_ + 7].set(matched_lab * posf)             # aux (unused by loss)
    return gres


# --------------------------------------------------------------------------
if __name__ == "__main__":
    key = jax.random.PRNGKey(0)
    B = 2
    N = sum(f * f for f in FSIZES)                                # 534

    # predictions (synthetic, deterministic)
    outs = 0.5 * jax.random.normal(key, (B, N, PDIM), dtype=jnp.float32)

    anchors = make_anchors(FSIZES)                                # (N, 2)

    # deterministic per-image targets (normalized ltrb boxes, 1-based labels)
    targets = [
        {"boxes": jnp.array([[0.314, 0.317, 0.710, 0.608]], jnp.float32),
         "labels": jnp.array([1.0], jnp.float32)},
        {"boxes": jnp.array([[0.10, 0.10, 0.45, 0.55],
                             [0.55, 0.40, 0.90, 0.90]], jnp.float32),
         "labels": jnp.array([2.0, 1.0], jnp.float32)},
    ]
    gres = jnp.stack(
        [match4fcos_v2_jax(t["boxes"], t["labels"], anchors) for t in targets], axis=0
    )                                                             # (B, N, GDIM)

    # Static side inputs packed ONCE (review: trim wrapper-side launches).
    anc_packed = jnp.pad(jnp.transpose(anchors, (1, 0)).astype(jnp.float32),
                         ((0, 0), (0, NPAD - N))).reshape(2, ROWS, 128)
    valid_packed = (jnp.arange(NPAD) < N).astype(jnp.float32).reshape(ROWS, 128)

    batch_parallel = _use_batch_parallel_grid()   # True only on v7x

    l_total, (l_cls_pos, l_cls_neg, l_conf, l_reg) = floss_pallas(
        outs, gres, anc_packed, valid_packed, batch_parallel=batch_parallel)
    l_total = jax.block_until_ready(l_total)

    log_dict = {
        "l_total": float(l_total),
        "l_cls_pos": float(l_cls_pos),
        "l_cls_neg": float(l_cls_neg),
        "l_conf": float(l_conf),
        "l_reg": float(l_reg),
    }
    assert jnp.isfinite(l_total)
    print("KERNEL_OK")
</pallas_src>

<mosaic_0001>
module attributes {stable_mosaic.version = 11 : i64} {
  func.func @_floss_kernel(%arg0: i32, %arg1: memref<2x18x8x128xf32, #tpu.memory_space<vmem>>, %arg2: memref<2x8x128xf32, #tpu.memory_space<vmem>>, %arg3: memref<8x128xf32, #tpu.memory_space<vmem>>, %arg4: memref<2x8xf32, #tpu.memory_space<smem>>) attributes {dimension_semantics = [#tpu.dimension_semantics<arbitrary>], iteration_bounds = array<i64: 1>, scalar_prefetch = 0 : i64, scratch_operands = 0 : i64, tpu.core_type = #tpu.core_type<tc>, window_params = [{transform_indices = @transform_0, window_bounds = array<i64: 2, 18, 8, 128>}, {pipeline_mode = #tpu.pipeline_mode<synchronous>, transform_indices = @transform_1, window_bounds = array<i64: 2, 8, 128>}, {pipeline_mode = #tpu.pipeline_mode<synchronous>, transform_indices = @transform_2, window_bounds = array<i64: 8, 128>}, {transform_indices = @transform_3, window_bounds = array<i64: 2, 8>}]} {
    %c0 = arith.constant 0 : index
    %c0_0 = arith.constant 0 : index
    %0 = vector.load %arg3[%c0, %c0_0] : memref<8x128xf32, #tpu.memory_space<vmem>>, vector<8x128xf32>
    %c0_1 = arith.constant 0 : index
    %c0_2 = arith.constant 0 : index
    %c0_3 = arith.constant 0 : index
    %c0_4 = arith.constant 0 : index
    %1 = vector.load %arg1[%c0_1, %c0_2, %c0_3, %c0_4] : memref<2x18x8x128xf32, #tpu.memory_space<vmem>>, vector<2x1x8x128xf32>
    %2 = vector.shape_cast %1 : vector<2x1x8x128xf32> to vector<2x8x128xf32>
    %c0_5 = arith.constant 0 : index
    %c7 = arith.constant 7 : index
    %c0_6 = arith.constant 0 : index
    %c0_7 = arith.constant 0 : index
    %3 = vector.load %arg1[%c0_5, %c7, %c0_6, %c0_7] : memref<2x18x8x128xf32, #tpu.memory_space<vmem>>, vector<2x1x8x128xf32>
    %4 = vector.shape_cast %3 : vector<2x1x8x128xf32> to vector<2x8x128xf32>
    %cst = arith.constant 0.000000e+00 : f32
    %5 = vector.broadcast %cst : f32 to vector<2x8x128xf32>
    %6 = arith.subf %5, %2 : vector<2x8x128xf32>
    %cst_8 = arith.constant 0.000000e+00 : f32
    %7 = vector.broadcast %cst_8 : f32 to vector<2x8x128xf32>
    %8 = arith.maximumf %6, %7 : vector<2x8x128xf32>
    %9 = math.absf %6 : vector<2x8x128xf32>
    %cst_9 = arith.constant 0.000000e+00 : f32
    %10 = vector.broadcast %cst_9 : f32 to vector<2x8x128xf32>
    %11 = arith.subf %10, %9 : vector<2x8x128xf32>
    %12 = math.exp %11 : vector<2x8x128xf32>
    %cst_10 = arith.constant 1.000000e+00 : f32
    %13 = vector.broadcast %cst_10 : f32 to vector<2x8x128xf32>
    %14 = arith.addf %13, %12 : vector<2x8x128xf32>
    %15 = math.log %14 : vector<2x8x128xf32>
    %16 = arith.addf %8, %15 : vector<2x8x128xf32>
    %17 = arith.addf %16, %2 : vector<2x8x128xf32>
    %cst_11 = arith.constant 0.000000e+00 : f32
    %18 = vector.broadcast %cst_11 : f32 to vector<2x8x128xf32>
    %19 = arith.subf %18, %16 : vector<2x8x128xf32>
    %20 = math.exp %19 : vector<2x8x128xf32>
    %cst_12 = arith.constant 1.000000e+00 : f32
    %21 = vector.broadcast %cst_12 : f32 to vector<2x8x128xf32>
    %22 = arith.subf %21, %20 : vector<2x8x128xf32>
    %cst_13 = arith.constant 2.500000e-01 : f32
    %23 = vector.broadcast %cst_13 : f32 to vector<2x8x128xf32>
    %24 = arith.mulf %23, %16 : vector<2x8x128xf32>
    %25 = arith.mulf %22, %22 : vector<2x8x128xf32>
    %26 = arith.mulf %24, %25 : vector<2x8x128xf32>
    %27 = arith.mulf %26, %4 : vector<2x8x128xf32>
    %cst_14 = arith.constant 7.500000e-01 : f32
    %28 = vector.broadcast %cst_14 : f32 to vector<2x8x128xf32>
    %29 = arith.mulf %28, %17 : vector<2x8x128xf32>
    %30 = arith.mulf %20, %20 : vector<2x8x128xf32>
    %31 = arith.mulf %29, %30 : vector<2x8x128xf32>
    %cst_15 = arith.constant 1.000000e+00 : f32
    %32 = vector.broadcast %cst_15 : f32 to vector<2x8x128xf32>
    %33 = arith.subf %32, %4 : vector<2x8x128xf32>
    %34 = arith.mulf %31, %33 : vector<2x8x128xf32>
    %c0_16 = arith.constant 0 : index
    %c1 = arith.constant 1 : index
    %c0_17 = arith.constant 0 : index
    %c0_18 = arith.constant 0 : index
    %35 = vector.load %arg1[%c0_16, %c1, %c0_17, %c0_18] : memref<2x18x8x128xf32, #tpu.memory_space<vmem>>, vector<2x1x8x128xf32>
    %36 = vector.shape_cast %35 : vector<2x1x8x128xf32> to vector<2x8x128xf32>
    %c0_19 = arith.constant 0 : index
    %c8 = arith.constant 8 : index
    %c0_20 = arith.constant 0 : index
    %c0_21 = arith.constant 0 : index
    %37 = vector.load %arg1[%c0_19, %c8, %c0_20, %c0_21] : memref<2x18x8x128xf32, #tpu.memory_space<vmem>>, vector<2x1x8x128xf32>
    %38 = vector.shape_cast %37 : vector<2x1x8x128xf32> to vector<2x8x128xf32>
    %cst_22 = arith.constant 0.000000e+00 : f32
    %39 = vector.broadcast %cst_22 : f32 to vector<2x8x128xf32>
    %40 = arith.subf %39, %36 : vector<2x8x128xf32>
    %cst_23 = arith.constant 0.000000e+00 : f32
    %41 = vector.broadcast %cst_23 : f32 to vector<2x8x128xf32>
    %42 = arith.maximumf %40, %41 : vector<2x8x128xf32>
    %43 = math.absf %40 : vector<2x8x128xf32>
    %cst_24 = arith.constant 0.000000e+00 : f32
    %44 = vector.broadcast %cst_24 : f32 to vector<2x8x128xf32>
    %45 = arith.subf %44, %43 : vector<2x8x128xf32>
    %46 = math.exp %45 : vector<2x8x128xf32>
    %cst_25 = arith.constant 1.000000e+00 : f32
    %47 = vector.broadcast %cst_25 : f32 to vector<2x8x128xf32>
    %48 = arith.addf %47, %46 : vector<2x8x128xf32>
    %49 = math.log %48 : vector<2x8x128xf32>
    %50 = arith.addf %42, %49 : vector<2x8x128xf32>
    %51 = arith.addf %50, %36 : vector<2x8x128xf32>
    %cst_26 = arith.constant 0.000000e+00 : f32
    %52 = vector.broadcast %cst_26 : f32 to vector<2x8x128xf32>
    %53 = arith.subf %52, %50 : vector<2x8x128xf32>
    %54 = math.exp %53 : vector<2x8x128xf32>
    %cst_27 = arith.constant 1.000000e+00 : f32
    %55 = vector.broadcast %cst_27 : f32 to vector<2x8x128xf32>
    %56 = arith.subf %55, %54 : vector<2x8x128xf32>
    %cst_28 = arith.constant 2.500000e-01 : f32
    %57 = vector.broadcast %cst_28 : f32 to vector<2x8x128xf32>
    %58 = arith.mulf %57, %50 : vector<2x8x128xf32>
    %59 = arith.mulf %56, %56 : vector<2x8x128xf32>
    %60 = arith.mulf %58, %59 : vector<2x8x128xf32>
    %61 = arith.mulf %60, %38 : vector<2x8x128xf32>
    %cst_29 = arith.constant 7.500000e-01 : f32
    %62 = vector.broadcast %cst_29 : f32 to vector<2x8x128xf32>
    %63 = arith.mulf %62, %51 : vector<2x8x128xf32>
    %64 = arith.mulf %54, %54 : vector<2x8x128xf32>
    %65 = arith.mulf %63, %64 : vector<2x8x128xf32>
    %cst_30 = arith.constant 1.000000e+00 : f32
    %66 = vector.broadcast %cst_30 : f32 to vector<2x8x128xf32>
    %67 = arith.subf %66, %38 : vector<2x8x128xf32>
    %68 = arith.mulf %65, %67 : vector<2x8x128xf32>
    %69 = arith.addf %27, %61 : vector<2x8x128xf32>
    %70 = arith.addf %34, %68 : vector<2x8x128xf32>
    %c0_31 = arith.constant 0 : index
    %c2 = arith.constant 2 : index
    %c0_32 = arith.constant 0 : index
    %c0_33 = arith.constant 0 : index
    %71 = vector.load %arg1[%c0_31, %c2, %c0_32, %c0_33] : memref<2x18x8x128xf32, #tpu.memory_space<vmem>>, vector<2x1x8x128xf32>
    %72 = vector.shape_cast %71 : vector<2x1x8x128xf32> to vector<2x8x128xf32>
    %c0_34 = arith.constant 0 : index
    %c9 = arith.constant 9 : index
    %c0_35 = arith.constant 0 : index
    %c0_36 = arith.constant 0 : index
    %73 = vector.load %arg1[%c0_34, %c9, %c0_35, %c0_36] : memref<2x18x8x128xf32, #tpu.memory_space<vmem>>, vector<2x1x8x128xf32>
    %74 = vector.shape_cast %73 : vector<2x1x8x128xf32> to vector<2x8x128xf32>
    %cst_37 = arith.constant 0.000000e+00 : f32
    %75 = vector.broadcast %cst_37 : f32 to vector<2x8x128xf32>
    %76 = arith.subf %75, %72 : vector<2x8x128xf32>
    %cst_38 = arith.constant 0.000000e+00 : f32
    %77 = vector.broadcast %cst_38 : f32 to vector<2x8x128xf32>
    %78 = arith.maximumf %76, %77 : vector<2x8x128xf32>
    %79 = math.absf %76 : vector<2x8x128xf32>
    %cst_39 = arith.constant 0.000000e+00 : f32
    %80 = vector.broadcast %cst_39 : f32 to vector<2x8x128xf32>
    %81 = arith.subf %80, %79 : vector<2x8x128xf32>
    %82 = math.exp %81 : vector<2x8x128xf32>
    %cst_40 = arith.constant 1.000000e+00 : f32
    %83 = vector.broadcast %cst_40 : f32 to vector<2x8x128xf32>
    %84 = arith.addf %83, %82 : vector<2x8x128xf32>
    %85 = math.log %84 : vector<2x8x128xf32>
    %86 = arith.addf %78, %85 : vector<2x8x128xf32>
    %87 = arith.addf %86, %72 : vector<2x8x128xf32>
    %cst_41 = arith.constant 0.000000e+00 : f32
    %88 = vector.broadcast %cst_41 : f32 to vector<2x8x128xf32>
    %89 = arith.subf %88, %86 : vector<2x8x128xf32>
    %90 = math.exp %89 : vector<2x8x128xf32>
    %cst_42 = arith.constant 1.000000e+00 : f32
    %91 = vector.broadcast %cst_42 : f32 to vector<2x8x128xf32>
    %92 = arith.subf %91, %90 : vector<2x8x128xf32>
    %cst_43 = arith.constant 2.500000e-01 : f32
    %93 = vector.broadcast %cst_43 : f32 to vector<2x8x128xf32>
    %94 = arith.mulf %93, %86 : vector<2x8x128xf32>
    %95 = arith.mulf %92, %92 : vector<2x8x128xf32>
    %96 = arith.mulf %94, %95 : vector<2x8x128xf32>
    %97 = arith.mulf %96, %74 : vector<2x8x128xf32>
    %cst_44 = arith.constant 7.500000e-01 : f32
    %98 = vector.broadcast %cst_44 : f32 to vector<2x8x128xf32>
    %99 = arith.mulf %98, %87 : vector<2x8x128xf32>
    %100 = arith.mulf %90, %90 : vector<2x8x128xf32>
    %101 = arith.mulf %99, %100 : vector<2x8x128xf32>
    %cst_45 = arith.constant 1.000000e+00 : f32
    %102 = vector.broadcast %cst_45 : f32 to vector<2x8x128xf32>
    %103 = arith.subf %102, %74 : vector<2x8x128xf32>
    %104 = arith.mulf %101, %103 : vector<2x8x128xf32>
    %105 = arith.addf %69, %97 : vector<2x8x128xf32>
    %106 = arith.addf %70, %104 : vector<2x8x128xf32>
    %107 = vector.shape_cast %0 : vector<8x128xf32> to vector<1x8x128xf32>
    %108 = vector.broadcast %107 : vector<1x8x128xf32> to vector<2x8x128xf32>
    %109 = arith.mulf %106, %108 : vector<2x8x128xf32>
    %110 = vector.extract_strided_slice %105 {offsets = [0, 0, 0], sizes = [1, 8, 128], strides = [1, 1, 1]} : vector<2x8x128xf32> to vector<1x8x128xf32>
    %111 = vector.shape_cast %110 : vector<1x8x128xf32> to vector<8x128xf32>
    %112 = vector.shape_cast %111 : vector<8x128xf32> to vector<1x8x128xf32>
    %cst_46 = arith.constant dense<0.000000e+00> : vector<1xf32>
    %113 = vector.multi_reduction <add>, %112, %cst_46 [1, 2] : vector<1x8x128xf32> to vector<1xf32>
    %114 = vector.shape_cast %113 : vector<1xf32> to vector<1x1x1xf32>
    %115 = vector.extract %114[0, 0, 0] : f32 from vector<1x1x1xf32>
    %c0_47 = arith.constant 0 : index
    %c0_48 = arith.constant 0 : index
    %116 = memref.load %arg4[%c0_47, %c0_48] : memref<2x8xf32, #tpu.memory_space<smem>>
    memref.store %115, %arg4[%c0_47, %c0_48] : memref<2x8xf32, #tpu.memory_space<smem>>
    %117 = vector.extract_strided_slice %109 {offsets = [0, 0, 0], sizes = [1, 8, 128], strides = [1, 1, 1]} : vector<2x8x128xf32> to vector<1x8x128xf32>
    %118 = vector.shape_cast %117 : vector<1x8x128xf32> to vector<8x128xf32>
    %119 = vector.shape_cast %118 : vector<8x128xf32> to vector<1x8x128xf32>
    %cst_49 = arith.constant dense<0.000000e+00> : vector<1xf32>
    %120 = vector.multi_reduction <add>, %119, %cst_49 [1, 2] : vector<1x8x128xf32> to vector<1xf32>
    %121 = vector.shape_cast %120 : vector<1xf32> to vector<1x1x1xf32>
    %122 = vector.extract %121[0, 0, 0] : f32 from vector<1x1x1xf32>
    %c0_50 = arith.constant 0 : index
    %c1_51 = arith.constant 1 : index
    %123 = memref.load %arg4[%c0_50, %c1_51] : memref<2x8xf32, #tpu.memory_space<smem>>
    memref.store %122, %arg4[%c0_50, %c1_51] : memref<2x8xf32, #tpu.memory_space<smem>>
    %124 = vector.extract_strided_slice %105 {offsets = [1, 0, 0], sizes = [1, 8, 128], strides = [1, 1, 1]} : vector<2x8x128xf32> to vector<1x8x128xf32>
    %125 = vector.shape_cast %124 : vector<1x8x128xf32> to vector<8x128xf32>
    %126 = vector.shape_cast %125 : vector<8x128xf32> to vector<1x8x128xf32>
    %cst_52 = arith.constant dense<0.000000e+00> : vector<1xf32>
    %127 = vector.multi_reduction <add>, %126, %cst_52 [1, 2] : vector<1x8x128xf32> to vector<1xf32>
    %128 = vector.shape_cast %127 : vector<1xf32> to vector<1x1x1xf32>
    %129 = vector.extract %128[0, 0, 0] : f32 from vector<1x1x1xf32>
    %c1_53 = arith.constant 1 : index
    %c0_54 = arith.constant 0 : index
    %130 = memref.load %arg4[%c1_53, %c0_54] : memref<2x8xf32, #tpu.memory_space<smem>>
    memref.store %129, %arg4[%c1_53, %c0_54] : memref<2x8xf32, #tpu.memory_space<smem>>
    %131 = vector.extract_strided_slice %109 {offsets = [1, 0, 0], sizes = [1, 8, 128], strides = [1, 1, 1]} : vector<2x8x128xf32> to vector<1x8x128xf32>
    %132 = vector.shape_cast %131 : vector<1x8x128xf32> to vector<8x128xf32>
    %133 = vector.shape_cast %132 : vector<8x128xf32> to vector<1x8x128xf32>
    %cst_55 = arith.constant dense<0.000000e+00> : vector<1xf32>
    %134 = vector.multi_reduction <add>, %133, %cst_55 [1, 2] : vector<1x8x128xf32> to vector<1xf32>
    %135 = vector.shape_cast %134 : vector<1xf32> to vector<1x1x1xf32>
    %136 = vector.extract %135[0, 0, 0] : f32 from vector<1x1x1xf32>
    %c1_56 = arith.constant 1 : index
    %c1_57 = arith.constant 1 : index
    %137 = memref.load %arg4[%c1_56, %c1_57] : memref<2x8xf32, #tpu.memory_space<smem>>
    memref.store %136, %arg4[%c1_56, %c1_57] : memref<2x8xf32, #tpu.memory_space<smem>>
    %c0_58 = arith.constant 0 : index
    %c15 = arith.constant 15 : index
    %c0_59 = arith.constant 0 : index
    %c0_60 = arith.constant 0 : index
    %138 = vector.load %arg1[%c0_58, %c15, %c0_59, %c0_60] : memref<2x18x8x128xf32, #tpu.memory_space<vmem>>, vector<2x1x8x128xf32>
    %139 = vector.shape_cast %138 : vector<2x1x8x128xf32> to vector<2x8x128xf32>
    %cst_61 = arith.constant 1.000000e+00 : f32
    %140 = vector.broadcast %cst_61 : f32 to vector<2x8x128xf32>
    %141 = arith.cmpf oeq, %139, %140 : vector<2x8x128xf32>
    %142 = arith.extui %141 : vector<2x8x128xi1> to vector<2x8x128xi32>
    %143 = arith.sitofp %142 : vector<2x8x128xi32> to vector<2x8x128xf32>
    %c0_62 = arith.constant 0 : index
    %c3 = arith.constant 3 : index
    %c0_63 = arith.constant 0 : index
    %c0_64 = arith.constant 0 : index
    %144 = vector.load %arg1[%c0_62, %c3, %c0_63, %c0_64] : memref<2x18x8x128xf32, #tpu.memory_space<vmem>>, vector<2x1x8x128xf32>
    %145 = vector.shape_cast %144 : vector<2x1x8x128xf32> to vector<2x8x128xf32>
    %cst_65 = arith.constant 0.000000e+00 : f32
    %146 = vector.broadcast %cst_65 : f32 to vector<2x8x128xf32>
    %147 = arith.subf %146, %145 : vector<2x8x128xf32>
    %cst_66 = arith.constant 0.000000e+00 : f32
    %148 = vector.broadcast %cst_66 : f32 to vector<2x8x128xf32>
    %149 = arith.maximumf %147, %148 : vector<2x8x128xf32>
    %150 = math.absf %147 : vector<2x8x128xf32>
    %cst_67 = arith.constant 0.000000e+00 : f32
    %151 = vector.broadcast %cst_67 : f32 to vector<2x8x128xf32>
    %152 = arith.subf %151, %150 : vector<2x8x128xf32>
    %153 = math.exp %152 : vector<2x8x128xf32>
    %cst_68 = arith.constant 1.000000e+00 : f32
    %154 = vector.broadcast %cst_68 : f32 to vector<2x8x128xf32>
    %155 = arith.addf %154, %153 : vector<2x8x128xf32>
    %156 = math.log %155 : vector<2x8x128xf32>
    %157 = arith.addf %149, %156 : vector<2x8x128xf32>
    %158 = arith.mulf %157, %143 : vector<2x8x128xf32>
    %159 = vector.extract_strided_slice %158 {offsets = [0, 0, 0], sizes = [1, 8, 128], strides = [1, 1, 1]} : vector<2x8x128xf32> to vector<1x8x128xf32>
    %160 = vector.shape_cast %159 : vector<1x8x128xf32> to vector<8x128xf32>
    %161 = vector.shape_cast %160 : vector<8x128xf32> to vector<1x8x128xf32>
    %cst_69 = arith.constant dense<0.000000e+00> : vector<1xf32>
    %162 = vector.multi_reduction <add>, %161, %cst_69 [1, 2] : vector<1x8x128xf32> to vector<1xf32>
    %163 = vector.shape_cast %162 : vector<1xf32> to vector<1x1x1xf32>
    %164 = vector.extract %163[0, 0, 0] : f32 from vector<1x1x1xf32>
    %c0_70 = arith.constant 0 : index
    %c2_71 = arith.constant 2 : index
    %165 = memref.load %arg4[%c0_70, %c2_71] : memref<2x8xf32, #tpu.memory_space<smem>>
    memref.store %164, %arg4[%c0_70, %c2_71] : memref<2x8xf32, #tpu.memory_space<smem>>
    %166 = vector.extract_strided_slice %158 {offsets = [1, 0, 0], sizes = [1, 8, 128], strides = [1, 1, 1]} : vector<2x8x128xf32> to vector<1x8x128xf32>
    %167 = vector.shape_cast %166 : vector<1x8x128xf32> to vector<8x128xf32>
    %168 = vector.shape_cast %167 : vector<8x128xf32> to vector<1x8x128xf32>
    %cst_72 = arith.constant dense<0.000000e+00> : vector<1xf32>
    %169 = vector.multi_reduction <add>, %168, %cst_72 [1, 2] : vector<1x8x128xf32> to vector<1xf32>
    %170 = vector.shape_cast %169 : vector<1xf32> to vector<1x1x1xf32>
    %171 = vector.extract %170[0, 0, 0] : f32 from vector<1x1x1xf32>
    %c1_73 = arith.constant 1 : index
    %c2_74 = arith.constant 2 : index
    %172 = memref.load %arg4[%c1_73, %c2_74] : memref<2x8xf32, #tpu.memory_space<smem>>
    memref.store %171, %arg4[%c1_73, %c2_74] : memref<2x8xf32, #tpu.memory_space<smem>>
    %c0_75 = arith.constant 0 : index
    %c7_76 = arith.constant 7 : index
    %c0_77 = arith.constant 0 : index
    %c0_78 = arith.constant 0 : index
    %173 = vector.load %arg1[%c0_75, %c7_76, %c0_77, %c0_78] : memref<2x18x8x128xf32, #tpu.memory_space<vmem>>, vector<2x1x8x128xf32>
    %174 = vector.shape_cast %173 : vector<2x1x8x128xf32> to vector<2x8x128xf32>
    %cst_79 = arith.constant 0.000000e+00 : f32
    %175 = vector.broadcast %cst_79 : f32 to vector<2x8x128xf32>
    %176 = arith.cmpf oeq, %174, %175 : vector<2x8x128xf32>
    %177 = arith.extui %176 : vector<2x8x128xi1> to vector<2x8x128xi32>
    %178 = arith.sitofp %177 : vector<2x8x128xi32> to vector<2x8x128xf32>
    %179 = vector.shape_cast %0 : vector<8x128xf32> to vector<1x8x128xf32>
    %180 = vector.broadcast %179 : vector<1x8x128xf32> to vector<2x8x128xf32>
    %181 = arith.mulf %178, %180 : vector<2x8x128xf32>
    %182 = vector.extract_strided_slice %181 {offsets = [0, 0, 0], sizes = [1, 8, 128], strides = [1, 1, 1]} : vector<2x8x128xf32> to vector<1x8x128xf32>
    %183 = vector.shape_cast %182 : vector<1x8x128xf32> to vector<8x128xf32>
    %184 = vector.shape_cast %183 : vector<8x128xf32> to vector<1x8x128xf32>
    %cst_80 = arith.constant dense<0.000000e+00> : vector<1xf32>
    %185 = vector.multi_reduction <add>, %184, %cst_80 [1, 2] : vector<1x8x128xf32> to vector<1xf32>
    %186 = vector.shape_cast %185 : vector<1xf32> to vector<1x1x1xf32>
    %187 = vector.extract %186[0, 0, 0] : f32 from vector<1x1x1xf32>
    %c0_81 = arith.constant 0 : index
    %c3_82 = arith.constant 3 : index
    %188 = memref.load %arg4[%c0_81, %c3_82] : memref<2x8xf32, #tpu.memory_space<smem>>
    memref.store %187, %arg4[%c0_81, %c3_82] : memref<2x8xf32, #tpu.memory_space<smem>>
    %189 = vector.extract_strided_slice %181 {offsets = [1, 0, 0], sizes = [1, 8, 128], strides = [1, 1, 1]} : vector<2x8x128xf32> to vector<1x8x128xf32>
    %190 = vector.shape_cast %189 : vector<1x8x128xf32> to vector<8x128xf32>
    %191 = vector.shape_cast %190 : vector<8x128xf32> to vector<1x8x128xf32>
    %cst_83 = arith.constant dense<0.000000e+00> : vector<1xf32>
    %192 = vector.multi_reduction <add>, %191, %cst_83 [1, 2] : vector<1x8x128xf32> to vector<1xf32>
    %193 = vector.shape_cast %192 : vector<1xf32> to vector<1x1x1xf32>
    %194 = vector.extract %193[0, 0, 0] : f32 from vector<1x1x1xf32>
    %c1_84 = arith.constant 1 : index
    %c3_85 = arith.constant 3 : index
    %195 = memref.load %arg4[%c1_84, %c3_85] : memref<2x8xf32, #tpu.memory_space<smem>>
    memref.store %194, %arg4[%c1_84, %c3_85] : memref<2x8xf32, #tpu.memory_space<smem>>
    %c0_86 = arith.constant 0 : index
    %c0_87 = arith.constant 0 : index
    %c0_88 = arith.constant 0 : index
    %196 = vector.load %arg2[%c0_86, %c0_87, %c0_88] : memref<2x8x128xf32, #tpu.memory_space<vmem>>, vector<1x8x128xf32>
    %197 = vector.shape_cast %196 : vector<1x8x128xf32> to vector<8x128xf32>
    %c1_89 = arith.constant 1 : index
    %c0_90 = arith.constant 0 : index
    %c0_91 = arith.constant 0 : index
    %198 = vector.load %arg2[%c1_89, %c0_90, %c0_91] : memref<2x8x128xf32, #tpu.memory_space<vmem>>, vector<1x8x128xf32>
    %199 = vector.shape_cast %198 : vector<1x8x128xf32> to vector<8x128xf32>
    %c0_92 = arith.constant 0 : index
    %c3_93 = arith.constant 3 : index
    %c0_94 = arith.constant 0 : index
    %c0_95 = arith.constant 0 : index
    %200 = vector.load %arg1[%c0_92, %c3_93, %c0_94, %c0_95] : memref<2x18x8x128xf32, #tpu.memory_space<vmem>>, vector<2x1x8x128xf32>
    %201 = vector.shape_cast %200 : vector<2x1x8x128xf32> to vector<2x8x128xf32>
    %202 = math.exp %201 : vector<2x8x128xf32>
    %203 = vector.shape_cast %197 : vector<8x128xf32> to vector<1x8x128xf32>
    %204 = vector.broadcast %203 : vector<1x8x128xf32> to vector<2x8x128xf32>
    %205 = arith.subf %204, %202 : vector<2x8x128xf32>
    %c0_96 = arith.constant 0 : index
    %c4 = arith.constant 4 : index
    %c0_97 = arith.constant 0 : index
    %c0_98 = arith.constant 0 : index
    %206 = vector.load %arg1[%c0_96, %c4, %c0_97, %c0_98] : memref<2x18x8x128xf32, #tpu.memory_space<vmem>>, vector<2x1x8x128xf32>
    %207 = vector.shape_cast %206 : vector<2x1x8x128xf32> to vector<2x8x128xf32>
    %208 = math.exp %207 : vector<2x8x128xf32>
    %209 = vector.shape_cast %199 : vector<8x128xf32> to vector<1x8x128xf32>
    %210 = vector.broadcast %209 : vector<1x8x128xf32> to vector<2x8x128xf32>
    %211 = arith.subf %210, %208 : vector<2x8x128xf32>
    %c0_99 = arith.constant 0 : index
    %c5 = arith.constant 5 : index
    %c0_100 = arith.constant 0 : index
    %c0_101 = arith.constant 0 : index
    %212 = vector.load %arg1[%c0_99, %c5, %c0_100, %c0_101] : memref<2x18x8x128xf32, #tpu.memory_space<vmem>>, vector<2x1x8x128xf32>
    %213 = vector.shape_cast %212 : vector<2x1x8x128xf32> to vector<2x8x128xf32>
    %214 = math.exp %213 : vector<2x8x128xf32>
    %215 = vector.shape_cast %197 : vector<8x128xf32> to vector<1x8x128xf32>
    %216 = vector.broadcast %215 : vector<1x8x128xf32> to vector<2x8x128xf32>
    %217 = arith.addf %216, %214 : vector<2x8x128xf32>
    %c0_102 = arith.constant 0 : index
    %c6 = arith.constant 6 : index
    %c0_103 = arith.constant 0 : index
    %c0_104 = arith.constant 0 : index
    %218 = vector.load %arg1[%c0_102, %c6, %c0_103, %c0_104] : memref<2x18x8x128xf32, #tpu.memory_space<vmem>>, vector<2x1x8x128xf32>
    %219 = vector.shape_cast %218 : vector<2x1x8x128xf32> to vector<2x8x128xf32>
    %220 = math.exp %219 : vector<2x8x128xf32>
    %221 = vector.shape_cast %199 : vector<8x128xf32> to vector<1x8x128xf32>
    %222 = vector.broadcast %221 : vector<1x8x128xf32> to vector<2x8x128xf32>
    %223 = arith.addf %222, %220 : vector<2x8x128xf32>
    %c0_105 = arith.constant 0 : index
    %c11 = arith.constant 11 : index
    %c0_106 = arith.constant 0 : index
    %c0_107 = arith.constant 0 : index
    %224 = vector.load %arg1[%c0_105, %c11, %c0_106, %c0_107] : memref<2x18x8x128xf32, #tpu.memory_space<vmem>>, vector<2x1x8x128xf32>
    %225 = vector.shape_cast %224 : vector<2x1x8x128xf32> to vector<2x8x128xf32>
    %c0_108 = arith.constant 0 : index
    %c12 = arith.constant 12 : index
    %c0_109 = arith.constant 0 : index
    %c0_110 = arith.constant 0 : index
    %226 = vector.load %arg1[%c0_108, %c12, %c0_109, %c0_110] : memref<2x18x8x128xf32, #tpu.memory_space<vmem>>, vector<2x1x8x128xf32>
    %227 = vector.shape_cast %226 : vector<2x1x8x128xf32> to vector<2x8x128xf32>
    %c0_111 = arith.constant 0 : index
    %c13 = arith.constant 13 : index
    %c0_112 = arith.constant 0 : index
    %c0_113 = arith.constant 0 : index
    %228 = vector.load %arg1[%c0_111, %c13, %c0_112, %c0_113] : memref<2x18x8x128xf32, #tpu.memory_space<vmem>>, vector<2x1x8x128xf32>
    %229 = vector.shape_cast %228 : vector<2x1x8x128xf32> to vector<2x8x128xf32>
    %c0_114 = arith.constant 0 : index
    %c14 = arith.constant 14 : index
    %c0_115 = arith.constant 0 : index
    %c0_116 = arith.constant 0 : index
    %230 = vector.load %arg1[%c0_114, %c14, %c0_115, %c0_116] : memref<2x18x8x128xf32, #tpu.memory_space<vmem>>, vector<2x1x8x128xf32>
    %231 = vector.shape_cast %230 : vector<2x1x8x128xf32> to vector<2x8x128xf32>
    %232 = arith.maximumf %205, %225 : vector<2x8x128xf32>
    %233 = arith.maximumf %211, %227 : vector<2x8x128xf32>
    %234 = arith.minimumf %217, %229 : vector<2x8x128xf32>
    %235 = arith.minimumf %223, %231 : vector<2x8x128xf32>
    %236 = arith.subf %234, %232 : vector<2x8x128xf32>
    %cst_117 = arith.constant 0.000000e+00 : f32
    %237 = vector.broadcast %cst_117 : f32 to vector<2x8x128xf32>
    %238 = arith.maximumf %236, %237 : vector<2x8x128xf32>
    %239 = arith.subf %235, %233 : vector<2x8x128xf32>
    %cst_118 = arith.constant 0.000000e+00 : f32
    %240 = vector.broadcast %cst_118 : f32 to vector<2x8x128xf32>
    %241 = arith.maximumf %239, %240 : vector<2x8x128xf32>
    %242 = arith.mulf %238, %241 : vector<2x8x128xf32>
    %243 = arith.subf %217, %205 : vector<2x8x128xf32>
    %244 = arith.subf %223, %211 : vector<2x8x128xf32>
    %245 = arith.mulf %243, %244 : vector<2x8x128xf32>
    %246 = arith.subf %229, %225 : vector<2x8x128xf32>
    %247 = arith.subf %231, %227 : vector<2x8x128xf32>
    %248 = arith.mulf %246, %247 : vector<2x8x128xf32>
    %249 = arith.addf %245, %248 : vector<2x8x128xf32>
    %250 = arith.subf %249, %242 : vector<2x8x128xf32>
    %cst_119 = arith.constant 9.99999997E-7 : f32
    %251 = vector.broadcast %cst_119 : f32 to vector<2x8x128xf32>
    %252 = arith.addf %250, %251 : vector<2x8x128xf32>
    %253 = arith.divf %242, %252 : vector<2x8x128xf32>
    %254 = arith.minimumf %205, %225 : vector<2x8x128xf32>
    %255 = arith.minimumf %211, %227 : vector<2x8x128xf32>
    %256 = arith.maximumf %217, %229 : vector<2x8x128xf32>
    %257 = arith.maximumf %223, %231 : vector<2x8x128xf32>
    %258 = arith.subf %256, %254 : vector<2x8x128xf32>
    %259 = arith.subf %257, %255 : vector<2x8x128xf32>
    %260 = arith.mulf %258, %259 : vector<2x8x128xf32>
    %261 = arith.subf %260, %250 : vector<2x8x128xf32>
    %cst_120 = arith.constant 9.99999997E-7 : f32
    %262 = vector.broadcast %cst_120 : f32 to vector<2x8x128xf32>
    %263 = arith.addf %260, %262 : vector<2x8x128xf32>
    %264 = arith.divf %261, %263 : vector<2x8x128xf32>
    %265 = arith.subf %253, %264 : vector<2x8x128xf32>
    %c0_121 = arith.constant 0 : index
    %c10 = arith.constant 10 : index
    %c0_122 = arith.constant 0 : index
    %c0_123 = arith.constant 0 : index
    %266 = vector.load %arg1[%c0_121, %c10, %c0_122, %c0_123] : memref<2x18x8x128xf32, #tpu.memory_space<vmem>>, vector<2x1x8x128xf32>
    %267 = vector.shape_cast %266 : vector<2x1x8x128xf32> to vector<2x8x128xf32>
    %cst_124 = arith.constant 1.000000e+00 : f32
    %268 = vector.broadcast %cst_124 : f32 to vector<2x8x128xf32>
    %269 = arith.subf %268, %265 : vector<2x8x128xf32>
    %270 = arith.mulf %181, %269 : vector<2x8x128xf32>
    %271 = arith.mulf %270, %267 : vector<2x8x128xf32>
    %272 = vector.extract_strided_slice %271 {offsets = [0, 0, 0], sizes = [1, 8, 128], strides = [1, 1, 1]} : vector<2x8x128xf32> to vector<1x8x128xf32>
    %273 = vector.shape_cast %272 : vector<1x8x128xf32> to vector<8x128xf32>
    %274 = vector.shape_cast %273 : vector<8x128xf32> to vector<1x8x128xf32>
    %cst_125 = arith.constant dense<0.000000e+00> : vector<1xf32>
    %275 = vector.multi_reduction <add>, %274, %cst_125 [1, 2] : vector<1x8x128xf32> to vector<1xf32>
    %276 = vector.shape_cast %275 : vector<1xf32> to vector<1x1x1xf32>
    %277 = vector.extract %276[0, 0, 0] : f32 from vector<1x1x1xf32>
    %c0_126 = arith.constant 0 : index
    %c4_127 = arith.constant 4 : index
    %278 = memref.load %arg4[%c0_126, %c4_127] : memref<2x8xf32, #tpu.memory_space<smem>>
    memref.store %277, %arg4[%c0_126, %c4_127] : memref<2x8xf32, #tpu.memory_space<smem>>
    %279 = vector.extract_strided_slice %271 {offsets = [1, 0, 0], sizes = [1, 8, 128], strides = [1, 1, 1]} : vector<2x8x128xf32> to vector<1x8x128xf32>
    %280 = vector.shape_cast %279 : vector<1x8x128xf32> to vector<8x128xf32>
    %281 = vector.shape_cast %280 : vector<8x128xf32> to vector<1x8x128xf32>
    %cst_128 = arith.constant dense<0.000000e+00> : vector<1xf32>
    %282 = vector.multi_reduction <add>, %281, %cst_128 [1, 2] : vector<1x8x128xf32> to vector<1xf32>
    %283 = vector.shape_cast %282 : vector<1xf32> to vector<1x1x1xf32>
    %284 = vector.extract %283[0, 0, 0] : f32 from vector<1x1x1xf32>
    %c1_129 = arith.constant 1 : index
    %c4_130 = arith.constant 4 : index
    %285 = memref.load %arg4[%c1_129, %c4_130] : memref<2x8xf32, #tpu.memory_space<smem>>
    memref.store %284, %arg4[%c1_129, %c4_130] : memref<2x8xf32, #tpu.memory_space<smem>>
    return
  }
  func.func @transform_0(%arg0: i32) -> (i32, i32, i32, i32) {
    %c0_i32 = arith.constant 0 : i32
    %c0_i32_0 = arith.constant 0 : i32
    %c0_i32_1 = arith.constant 0 : i32
    %c0_i32_2 = arith.constant 0 : i32
    return %arg0, %c0_i32, %c0_i32_0, %c0_i32_1 : i32, i32, i32, i32
  }
  func.func @transform_1(%arg0: i32) -> (i32, i32, i32) {
    %c0_i32 = arith.constant 0 : i32
    %c0_i32_0 = arith.constant 0 : i32
    %c0_i32_1 = arith.constant 0 : i32
    %c0_i32_2 = arith.constant 0 : i32
    return %c0_i32, %c0_i32_0, %c0_i32_1 : i32, i32, i32
  }
  func.func @transform_2(%arg0: i32) -> (i32, i32) {
    %c0_i32 = arith.constant 0 : i32
    %c0_i32_0 = arith.constant 0 : i32
    %c0_i32_1 = arith.constant 0 : i32
    return %c0_i32, %c0_i32_0 : i32, i32
  }
  func.func @transform_3(%arg0: i32) -> (i32, i32) {
    %c0_i32 = arith.constant 0 : i32
    %c0_i32_0 = arith.constant 0 : i32
    %c0_i32_1 = arith.constant 0 : i32
    return %c0_i32, %c0_i32_0 : i32, i32
  }
}

</mosaic_0001>

<llo_original>
// kernel: floss_pallas.1
$region0: #{floss_pallas.1}
  #allocation0 [shape = 'u32[]', space=smem, size = 0x4, offset = 0x4, fixed_abs, tag = 'smem constant byte address 0x4 - core index']
  #allocation1 [shape = 'u32[144,128]{1,0:T(1,128)}', space=vmem, size = 0x12000, scoped, tag = 'internal scratch']
  %s0 = inlined_call_operand.vmem [shape: f32[2,18,8,128], index: 0, kind: input, shape index: {}]
  %s1 = inlined_call_operand.vmem [shape: f32[2,8,128], index: 1, kind: input, shape index: {}]
  %s2 = inlined_call_operand.vmem [shape: f32[8,128], index: 2, kind: input, shape index: {}]
  %s3 = inlined_call_operand.vmem [shape: f32[2,8], index: 3, kind: output, shape index: {}]
  %s4 = sld [smem:[#allocation0]]
  $region22: #{floss_pallas.1} parent=0
    _
  %s6 = ssub.s32 1, %s4
  %s7 = scalar_select 0, %s6, %s4
  $region1: #{floss_pallas.1} parent=0
    #allocation2 [shape = 'u8[1024]{0}', space=smem, size = 0x400, scoped, tag = 'output window, operand 0, single buffered']
    #allocation3 [shape = 's32[1]{0}', space=sflag, size = 0x4, scoped, tag = 'scoped memory for floss_pallas.1']
    %8 = vsyncpa [#allocation3], 0
    // Predicated region
    $region2: #{floss_pallas.1} parent=1 // pred_check
      _
    $region3: #{floss_pallas.1} parent=1 // pred_check_branch
      %10 = sbr.rel (0) target = $region5
    $region4: #{floss_pallas.1} parent=1 // pred_region
      _
    $region5: #{floss_pallas.1} parent=1 // pred_fallthru
      _
    // Predicated region
    $region6: #{floss_pallas.1} parent=1 // pred_check
      _
    $region7: #{floss_pallas.1} parent=1 // pred_check_branch
      %12 = sbr.rel (0) target = $region9
    $region8: #{floss_pallas.1} parent=1 // pred_region
      _
    $region9: #{floss_pallas.1} parent=1 // pred_fallthru
      _
    // Predicated region
    $region10: #{floss_pallas.1} parent=1 // pred_check
      _
    $region11: #{floss_pallas.1} parent=1 // pred_check_branch
      %14 = sbr.rel (0) target = $region13
    $region12: #{floss_pallas.1} parent=1 // pred_region
      _
    $region13: #{floss_pallas.1} parent=1 // pred_fallthru
      _
    %v15 = vld [vmem:[%s2] sm:$0xff]
    %v16 = vld [vmem:[%s0] sm:$0xff]
    %v17 = vld [vmem:[%s0 + $0x90] sm:$0xff]
    %s18 = scalar_lea.vmem %s0, 56
    %v19 = vld [vmem:[%s18] sm:$0xff]
    %v20 = vld [vmem:[%s18 + $0x90] sm:$0xff]
    %v21 = vsub.f32 0.0, %v16
    %v22 = vsub.f32 0.0, %v17
    %v23 = vmax.f32 %v21, 0.0
    %v24 = vmax.f32 %v22, 0.0
    %v25 = vand.u32 2147483647, %v21
    %v26 = vand.u32 2147483647, %v22
    %v27 = vsub.f32 0.0, %v25
    %v28 = vsub.f32 0.0, %v26
    %v29 = vmul.f32 %v27, 1.442695
    %v30 = vpow.pop %v29
    %v31 = vmul.f32 %v28, 1.442695
    %v32 = vpow.pop %v31
    %v33 = vadd.f32 %v30, 1.0
    %v34 = vadd.f32 %v32, 1.0
    %v35 = vlog2.pop %v33
    %v36 = vmul.f32 %v35, 0.6931472
    %v37 = vlog2.pop %v34
    %v38 = vmul.f32 %v37, 0.6931472
    %v39 = vadd.f32 %v23, %v36
    %v40 = vadd.f32 %v24, %v38
    %v41 = vadd.f32 %v39, %v16
    %v42 = vadd.f32 %v40, %v17
    %v43 = vsub.f32 0.0, %v39
    %v44 = vsub.f32 0.0, %v40
    %v45 = vmul.f32 %v43, 1.442695
    %v46 = vpow.pop %v45
    %v47 = vmul.f32 %v44, 1.442695
    %v48 = vpow.pop %v47
    %v49 = vsub.f32 1.0, %v46
    %v50 = vsub.f32 1.0, %v48
    %v51 = vmul.f32 %v39, 0.25
    %v52 = vmul.f32 %v40, 0.25
    %v53 = vmul.f32 %v49, %v49
    %v54 = vmul.f32 %v50, %v50
    %v55 = vmul.f32 %v51, %v53
    %v56 = vmul.f32 %v52, %v54
    %v57 = vmul.f32 %v55, %v19
    %v58 = vmul.f32 %v56, %v20
    %v59 = vmul.f32 %v41, 0.75
    %v60 = vmul.f32 %v42, 0.75
    %v61 = vmul.f32 %v46, %v46
    %v62 = vmul.f32 %v48, %v48
    %v63 = vmul.f32 %v59, %v61
    %v64 = vmul.f32 %v60, %v62
    %v65 = vsub.f32 1.0, %v19
    %v66 = vsub.f32 1.0, %v20
    %v67 = vmul.f32 %v63, %v65
    %v68 = vmul.f32 %v64, %v66
    %s69 = scalar_lea.vmem %s0, 8
    %v70 = vld [vmem:[%s69] sm:$0xff]
    %v71 = vld [vmem:[%s69 + $0x90] sm:$0xff]
    %s72 = scalar_lea.vmem %s0, 64
    %v73 = vld [vmem:[%s72] sm:$0xff]
    %v74 = vld [vmem:[%s72 + $0x90] sm:$0xff]
    %v75 = vsub.f32 0.0, %v70
    %v76 = vsub.f32 0.0, %v71
    %v77 = vmax.f32 %v75, 0.0
    %v78 = vmax.f32 %v76, 0.0
    %v79 = vand.u32 2147483647, %v75
    %v80 = vand.u32 2147483647, %v76
    %v81 = vsub.f32 0.0, %v79
    %v82 = vsub.f32 0.0, %v80
    %v83 = vmul.f32 %v81, 1.442695
    %v84 = vpow.pop %v83
    %v85 = vmul.f32 %v82, 1.442695
    %v86 = vpow.pop %v85
    %v87 = vadd.f32 %v84, 1.0
    %v88 = vadd.f32 %v86, 1.0
    %v89 = vlog2.pop %v87
    %v90 = vmul.f32 %v89, 0.6931472
    %v91 = vlog2.pop %v88
    %v92 = vmul.f32 %v91, 0.6931472
    %v93 = vadd.f32 %v77, %v90
    %v94 = vadd.f32 %v78, %v92
    %v95 = vadd.f32 %v93, %v70
    %v96 = vadd.f32 %v94, %v71
    %v97 = vsub.f32 0.0, %v93
    %v98 = vsub.f32 0.0, %v94
    %v99 = vmul.f32 %v97, 1.442695
    %v100 = vpow.pop %v99
    %v101 = vmul.f32 %v98, 1.442695
    %v102 = vpow.pop %v101
    %v103 = vsub.f32 1.0, %v100
    %v104 = vsub.f32 1.0, %v102
    %v105 = vmul.f32 %v93, 0.25
    %v106 = vmul.f32 %v94, 0.25
    %v107 = vmul.f32 %v103, %v103
    %v108 = vmul.f32 %v104, %v104
    %v109 = vmul.f32 %v105, %v107
    %v110 = vmul.f32 %v106, %v108
    %v111 = vmul.f32 %v109, %v73
    %v112 = vmul.f32 %v110, %v74
    %v113 = vmul.f32 %v95, 0.75
    %v114 = vmul.f32 %v96, 0.75
    %v115 = vmul.f32 %v100, %v100
    %v116 = vmul.f32 %v102, %v102
    %v117 = vmul.f32 %v113, %v115
    %v118 = vmul.f32 %v114, %v116
    %v119 = vsub.f32 1.0, %v73
    %v120 = vsub.f32 1.0, %v74
    %v121 = vmul.f32 %v117, %v119
    %v122 = vmul.f32 %v118, %v120
    %v123 = vadd.f32 %v57, %v111
    %v124 = vadd.f32 %v58, %v112
    %v125 = vadd.f32 %v67, %v121
    %v126 = vadd.f32 %v68, %v122
    %s127 = scalar_lea.vmem %s0, 16
    %v128 = vld [vmem:[%s127] sm:$0xff]
    %v129 = vld [vmem:[%s127 + $0x90] sm:$0xff]
    %s130 = scalar_lea.vmem %s0, 72
    %v131 = vld [vmem:[%s130] sm:$0xff]
    %v132 = vld [vmem:[%s130 + $0x90] sm:$0xff]
    %v133 = vsub.f32 0.0, %v128
    %v134 = vsub.f32 0.0, %v129
    %v135 = vmax.f32 %v133, 0.0
    %v136 = vmax.f32 %v134, 0.0
    %v137 = vand.u32 2147483647, %v133
    %v138 = vand.u32 2147483647, %v134
    %v139 = vsub.f32 0.0, %v137
    %v140 = vsub.f32 0.0, %v138
    %v141 = vmul.f32 %v139, 1.442695
    %v142 = vpow.pop %v141
    %v143 = vmul.f32 %v140, 1.442695
    %v144 = vpow.pop %v143
    %v145 = vadd.f32 %v142, 1.0
    %v146 = vadd.f32 %v144, 1.0
    %v147 = vlog2.pop %v145
    %v148 = vmul.f32 %v147, 0.6931472
    %v149 = vlog2.pop %v146
    %v150 = vmul.f32 %v149, 0.6931472
    %v151 = vadd.f32 %v135, %v148
    %v152 = vadd.f32 %v136, %v150
    %v153 = vadd.f32 %v151, %v128
    %v154 = vadd.f32 %v152, %v129
    %v155 = vsub.f32 0.0, %v151
    %v156 = vsub.f32 0.0, %v152
    %v157 = vmul.f32 %v155, 1.442695
    %v158 = vpow.pop %v157
    %v159 = vmul.f32 %v156, 1.442695
    %v160 = vpow.pop %v159
    %v161 = vsub.f32 1.0, %v158
    %v162 = vsub.f32 1.0, %v160
    %v163 = vmul.f32 %v151, 0.25
    %v164 = vmul.f32 %v152, 0.25
    %v165 = vmul.f32 %v161, %v161
    %v166 = vmul.f32 %v162, %v162
    %v167 = vmul.f32 %v163, %v165
    %v168 = vmul.f32 %v164, %v166
    %v169 = vmul.f32 %v167, %v131
    %v170 = vmul.f32 %v168, %v132
    %v171 = vmul.f32 %v153, 0.75
    %v172 = vmul.f32 %v154, 0.75
    %v173 = vmul.f32 %v158, %v158
    %v174 = vmul.f32 %v160, %v160
    %v175 = vmul.f32 %v171, %v173
    %v176 = vmul.f32 %v172, %v174
    %v177 = vsub.f32 1.0, %v131
    %v178 = vsub.f32 1.0, %v132
    %v179 = vmul.f32 %v175, %v177
    %v180 = vmul.f32 %v176, %v178
    %v181 = vadd.f32 %v123, %v169
    %v182 = vadd.f32 %v124, %v170
    %v183 = vadd.f32 %v125, %v179
    %v184 = vadd.f32 %v126, %v180
    %v185 = vmul.f32 %v183, %v15
    %v186 = vmul.f32 %v184, %v15
    %187 = vadd.xlane.f32.xlu0 %v181
    %v188 = vpop.xlane.xlu0 %187
    %v189 = vrot.slane %v188, 4
    %v190 = vadd.f32 %v188, %v189
    %v191 = vrot.slane %v190, 2
    %v192 = vadd.f32 %v190, %v191
    %v193 = vrot.slane %v192, 1
    %v194 = vadd.f32 %v192, %v193
    %s195 = vtos %v194
    %s196 = scalar_lea.smem [#allocation2], 0
    %197 = sst [smem:[%s196]] %s195
    %198 = vadd.xlane.f32.xlu0 %v185
    %v199 = vpop.xlane.xlu0 %198
    %v200 = vrot.slane %v199, 4
    %v201 = vadd.f32 %v199, %v200
    %v202 = vrot.slane %v201, 2
    %v203 = vadd.f32 %v201, %v202
    %v204 = vrot.slane %v203, 1
    %v205 = vadd.f32 %v203, %v204
    %s206 = vtos %v205
    %s207 = scalar_lea.smem [#allocation2], 1
    %208 = sst [smem:[%s207]] %s206
    %209 = vadd.xlane.f32.xlu0 %v182
    %v210 = vpop.xlane.xlu0 %209
    %v211 = vrot.slane %v210, 4
    %v212 = vadd.f32 %v210, %v211
    %v213 = vrot.slane %v212, 2
    %v214 = vadd.f32 %v212, %v213
    %v215 = vrot.slane %v214, 1
    %v216 = vadd.f32 %v214, %v215
    %s217 = vtos %v216
    %s218 = scalar_lea.smem [#allocation2], 128
    %219 = sst [smem:[%s218]] %s217
    %220 = vadd.xlane.f32.xlu0 %v186
    %v221 = vpop.xlane.xlu0 %220
    %v222 = vrot.slane %v221, 4
    %v223 = vadd.f32 %v221, %v222
    %v224 = vrot.slane %v223, 2
    %v225 = vadd.f32 %v223, %v224
    %v226 = vrot.slane %v225, 1
    %v227 = vadd.f32 %v225, %v226
    %s228 = vtos %v227
    %s229 = scalar_lea.smem [#allocation2], 129
    %230 = sst [smem:[%s229]] %s228
    %s231 = scalar_lea.vmem %s0, 120
    %v232 = vld [vmem:[%s231] sm:$0xff]
    %v233 = vld [vmem:[%s231 + $0x90] sm:$0xff]
    %vm234 = vcmp.eq.f32.partialorder %v232, 1.0
    %vm235 = vcmp.eq.f32.partialorder %v233, 1.0
    %v236 = vsel %vm234, 1, 0
    %v237 = vsel %vm235, 1, 0
    %v238 = vcvt.s32.f32 %v236
    %v239 = vcvt.s32.f32 %v237
    %s240 = scalar_lea.vmem %s0, 24
    %v241 = vld [vmem:[%s240] sm:$0xff]
    %v242 = vld [vmem:[%s240 + $0x90] sm:$0xff]
    %v243 = vsub.f32 0.0, %v241
    %v244 = vsub.f32 0.0, %v242
    %v245 = vmax.f32 %v243, 0.0
    %v246 = vmax.f32 %v244, 0.0
    %v247 = vand.u32 2147483647, %v243
    %v248 = vand.u32 2147483647, %v244
    %v249 = vsub.f32 0.0, %v247
    %v250 = vsub.f32 0.0, %v248
    %v251 = vmul.f32 %v249, 1.442695
    %v252 = vpow.pop %v251
    %v253 = vmul.f32 %v250, 1.442695
    %v254 = vpow.pop %v253
    %v255 = vadd.f32 %v252, 1.0
    %v256 = vadd.f32 %v254, 1.0
    %v257 = vlog2.pop %v255
    %v258 = vmul.f32 %v257, 0.6931472
    %v259 = vlog2.pop %v256
    %v260 = vmul.f32 %v259, 0.6931472
    %v261 = vadd.f32 %v245, %v258
    %v262 = vadd.f32 %v246, %v260
    %v263 = vmul.f32 %v261, %v238
    %v264 = vmul.f32 %v262, %v239
    %265 = vadd.xlane.f32.xlu0 %v263
    %v266 = vpop.xlane.xlu0 %265
    %v267 = vrot.slane %v266, 4
    %v268 = vadd.f32 %v266, %v267
    %v269 = vrot.slane %v268, 2
    %v270 = vadd.f32 %v268, %v269
    %v271 = vrot.slane %v270, 1
    %v272 = vadd.f32 %v270, %v271
    %s273 = vtos %v272
    %s274 = scalar_lea.smem [#allocation2], 2
    %275 = sst [smem:[%s274]] %s273
    %276 = vadd.xlane.f32.xlu0 %v264
    %v277 = vpop.xlane.xlu0 %276
    %v278 = vrot.slane %v277, 4
    %v279 = vadd.f32 %v277, %v278
    %v280 = vrot.slane %v279, 2
    %v281 = vadd.f32 %v279, %v280
    %v282 = vrot.slane %v281, 1
    %v283 = vadd.f32 %v281, %v282
    %s284 = vtos %v283
    %s285 = scalar_lea.smem [#allocation2], 130
    %286 = sst [smem:[%s285]] %s284
    %v287 = vld [vmem:[%s18] sm:$0xff]
    %v288 = vld [vmem:[%s18 + $0x90] sm:$0xff]
    %vm289 = vcmp.eq.f32.partialorder %v287, 0.0
    %vm290 = vcmp.eq.f32.partialorder %v288, 0.0
    %v291 = vsel %vm289, 1, 0
    %v292 = vsel %vm290, 1, 0
    %v293 = vcvt.s32.f32 %v291
    %v294 = vcvt.s32.f32 %v292
    %v295 = vmul.f32 %v293, %v15
    %v296 = vmul.f32 %v294, %v15
    %297 = vadd.xlane.f32.xlu0 %v295
    %v298 = vpop.xlane.xlu0 %297
    %v299 = vrot.slane %v298, 4
    %v300 = vadd.f32 %v298, %v299
    %v301 = vrot.slane %v300, 2
    %v302 = vadd.f32 %v300, %v301
    %v303 = vrot.slane %v302, 1
    %v304 = vadd.f32 %v302, %v303
    %s305 = vtos %v304
    %s306 = scalar_lea.smem [#allocation2], 3
    %307 = sst [smem:[%s306]] %s305
    %308 = vadd.xlane.f32.xlu0 %v296
    %v309 = vpop.xlane.xlu0 %308
    %v310 = vrot.slane %v309, 4
    %v311 = vadd.f32 %v309, %v310
    %v312 = vrot.slane %v311, 2
    %v313 = vadd.f32 %v311, %v312
    %v314 = vrot.slane %v313, 1
    %v315 = vadd.f32 %v313, %v314
    %s316 = vtos %v315
    %s317 = scalar_lea.smem [#allocation2], 131
    %318 = sst [smem:[%s317]] %s316
    %v319 = vld [vmem:[%s1] sm:$0xff]
    %s320 = scalar_lea.vmem %s1, 8
    %v321 = vld [vmem:[%s320] sm:$0xff]
    %v322 = vld [vmem:[%s240] sm:$0xff]
    %v323 = vld [vmem:[%s240 + $0x90] sm:$0xff]
    %v324 = vmul.f32 %v322, 1.442695
    %v325 = vpow.pop %v324
    %v326 = vmul.f32 %v323, 1.442695
    %v327 = vpow.pop %v326
    %v328 = vsub.f32 %v319, %v325
    %v329 = vsub.f32 %v319, %v327
    %s330 = scalar_lea.vmem %s0, 32
    %v331 = vld [vmem:[%s330] sm:$0xff]
    %v332 = vld [vmem:[%s330 + $0x90] sm:$0xff]
    %v333 = vmul.f32 %v331, 1.442695
    %v334 = vpow.pop %v333
    %v335 = vmul.f32 %v332, 1.442695
    %v336 = vpow.pop %v335
    %v337 = vsub.f32 %v321, %v334
    %v338 = vsub.f32 %v321, %v336
    %s339 = scalar_lea.vmem %s0, 40
    %v340 = vld [vmem:[%s339] sm:$0xff]
    %v341 = vld [vmem:[%s339 + $0x90] sm:$0xff]
    %v342 = vmul.f32 %v340, 1.442695
    %v343 = vpow.pop %v342
    %v344 = vmul.f32 %v341, 1.442695
    %v345 = vpow.pop %v344
    %v346 = vadd.f32 %v319, %v343
    %v347 = vadd.f32 %v319, %v345
    %s348 = scalar_lea.vmem %s0, 48
    %v349 = vld [vmem:[%s348] sm:$0xff]
    %v350 = vld [vmem:[%s348 + $0x90] sm:$0xff]
    %v351 = vmul.f32 %v349, 1.442695
    %v352 = vpow.pop %v351
    %v353 = vmul.f32 %v350, 1.442695
    %v354 = vpow.pop %v353
    %v355 = vadd.f32 %v321, %v352
    %v356 = vadd.f32 %v321, %v354
    %s357 = scalar_lea.vmem %s0, 88
    %v358 = vld [vmem:[%s357] sm:$0xff]
    %v359 = vld [vmem:[%s357 + $0x90] sm:$0xff]
    %s360 = scalar_lea.vmem %s0, 96
    %v361 = vld [vmem:[%s360] sm:$0xff]
    %v362 = vld [vmem:[%s360 + $0x90] sm:$0xff]
    %s363 = scalar_lea.vmem %s0, 104
    %v364 = vld [vmem:[%s363] sm:$0xff]
    %v365 = vld [vmem:[%s363 + $0x90] sm:$0xff]
    %s366 = scalar_lea.vmem %s0, 112
    %v367 = vld [vmem:[%s366] sm:$0xff]
    %v368 = vld [vmem:[%s366 + $0x90] sm:$0xff]
    %v369 = vmax.f32 %v328, %v358
    %v370 = vmax.f32 %v329, %v359
    %v371 = vmax.f32 %v337, %v361
    %v372 = vmax.f32 %v338, %v362
    %v373 = vmin.f32 %v346, %v364
    %v374 = vmin.f32 %v347, %v365
    %v375 = vmin.f32 %v355, %v367
    %v376 = vmin.f32 %v356, %v368
    %v377 = vsub.f32 %v373, %v369
    %v378 = vsub.f32 %v374, %v370
    %v379 = vmax.f32 %v377, 0.0
    %v380 = vmax.f32 %v378, 0.0
    %v381 = vsub.f32 %v375, %v371
    %v382 = vsub.f32 %v376, %v372
    %v383 = vmax.f32 %v381, 0.0
    %v384 = vmax.f32 %v382, 0.0
    %v385 = vmul.f32 %v379, %v383
    %v386 = vmul.f32 %v380, %v384
    %v387 = vsub.f32 %v346, %v328
    %v388 = vsub.f32 %v347, %v329
    %v389 = vsub.f32 %v355, %v337
    %v390 = vsub.f32 %v356, %v338
    %v391 = vmul.f32 %v387, %v389
    %v392 = vmul.f32 %v388, %v390
    %v393 = vsub.f32 %v364, %v358
    %v394 = vsub.f32 %v365, %v359
    %v395 = vsub.f32 %v367, %v361
    %v396 = vsub.f32 %v368, %v362
    %v397 = vmul.f32 %v393, %v395
    %v398 = vmul.f32 %v394, %v396
    %v399 = vadd.f32 %v391, %v397
    %v400 = vadd.f32 %v392, %v398
    %v401 = vsub.f32 %v399, %v385
    %v402 = vsub.f32 %v400, %v386
    %v403 = vadd.f32 %v401, 1e-06
    %v404 = vadd.f32 %v402, 1e-06
    %v405 = vrcp.pop %v403
    %v406 = vmul.f32 %v385, %v405
    %v407 = vrcp.pop %v404
    %v408 = vmul.f32 %v386, %v407
    %v409 = vmin.f32 %v328, %v358
    %v410 = vmin.f32 %v329, %v359
    %v411 = vmin.f32 %v337, %v361
    %v412 = vmin.f32 %v338, %v362
    %v413 = vmax.f32 %v346, %v364
    %v414 = vmax.f32 %v347, %v365
    %v415 = vmax.f32 %v355, %v367
    %v416 = vmax.f32 %v356, %v368
    %v417 = vsub.f32 %v413, %v409
    %v418 = vsub.f32 %v414, %v410
    %v419 = vsub.f32 %v415, %v411
    %v420 = vsub.f32 %v416, %v412
    %v421 = vmul.f32 %v417, %v419
    %v422 = vmul.f32 %v418, %v420
    %v423 = vsub.f32 %v421, %v401
    %v424 = vsub.f32 %v422, %v402
    %v425 = vadd.f32 %v421, 1e-06
    %v426 = vadd.f32 %v422, 1e-06
    %v427 = vrcp.pop %v425
    %v428 = vmul.f32 %v423, %v427
    %v429 = vrcp.pop %v426
    %v430 = vmul.f32 %v424, %v429
    %v431 = vsub.f32 %v406, %v428
    %v432 = vsub.f32 %v408, %v430
    %s433 = scalar_lea.vmem %s0, 80
    %v434 = vld [vmem:[%s433] sm:$0xff]
    %v435 = vld [vmem:[%s433 + $0x90] sm:$0xff]
    %v436 = vsub.f32 1.0, %v431
    %v437 = vsub.f32 1.0, %v432
    %v438 = vmul.f32 %v295, %v436
    %v439 = vmul.f32 %v296, %v437
    %v440 = vmul.f32 %v438, %v434
    %v441 = vmul.f32 %v439, %v435
    %442 = vadd.xlane.f32.xlu0 %v440
    %v443 = vpop.xlane.xlu0 %442
    %v444 = vrot.slane %v443, 4
    %v445 = vadd.f32 %v443, %v444
    %v446 = vrot.slane %v445, 2
    %v447 = vadd.f32 %v445, %v446
    %v448 = vrot.slane %v447, 1
    %v449 = vadd.f32 %v447, %v448
    %s450 = vtos %v449
    %s451 = scalar_lea.smem [#allocation2], 4
    %452 = sst [smem:[%s451]] %s450
    %453 = vadd.xlane.f32.xlu0 %v441
    %v454 = vpop.xlane.xlu0 %453
    %v455 = vrot.slane %v454, 4
    %v456 = vadd.f32 %v454, %v455
    %v457 = vrot.slane %v456, 2
    %v458 = vadd.f32 %v456, %v457
    %v459 = vrot.slane %v458, 1
    %v460 = vadd.f32 %v458, %v459
    %s461 = vtos %v460
    %s462 = scalar_lea.smem [#allocation2], 132
    %463 = sst [smem:[%s462]] %s461
    // Predicated region
    $region14: #{floss_pallas.1} parent=1 // pred_check
      _
    $region15: #{floss_pallas.1} parent=1 // pred_check_branch
      %465 = sbr.rel (0) target = $region17
    $region16: #{floss_pallas.1} parent=1 // pred_region
      %s467 = ssub.s32 32, 32
      %468 = vsyncadd [#allocation3], %s467
      %s470 = sshll.u32 %s3, 4
      %s471 = int_to_ptr.vmem [resolvable:$true] %s470
      %473 = dma.smem_to_vmem [#allocation2], 32, %s471, [#allocation3]
    $region17: #{floss_pallas.1} parent=1 // pred_fallthru
      _
    // Predicated region
    $region18: #{floss_pallas.1} parent=1 // pred_check
      _
    $region19: #{floss_pallas.1} parent=1 // pred_check_branch
      %475 = sbr.rel (0) target = $region21
    $region20: #{floss_pallas.1} parent=1 // pred_region
      %476 = dma.done [#allocation3], 32
    $region21: #{floss_pallas.1} parent=1 // pred_fallthru
      _
    %477 = sfence
    %478 = vsyncpa [#allocation3], 1

</llo_original>
